<compile_context>
chip_gen: v7x
topology: tpu7x:2x2x1
jax: 0.10.0
libtpu: 0.0.40
codegen_flags: <defaults>
</compile_context>

<pallas_src>
import functools

import jax
import jax.numpy as jnp
from jax.experimental import pallas as pl
from jax.experimental.pallas import tpu as pltpu

LANE = 128
SUBLANE = 8
NUM_CORE_SHARDS = 2   # leading "parallel" grid axis; uses both TCs on v7x, harmless on 1-TC chips
MAX_TILE_ROWS = 8192  # 8192 rows x 128 lanes x 4 B = 4 MiB per block
VMEM_LIMIT_BYTES = 32 * 1024 * 1024


def _sq_diff_kernel(old_ref, new_ref, out_ref):
    # out_ref is a (1, 8, 128) block whose index depends only on the (parallel)
    # core-shard axis -> it stays resident in VMEM across the reduction axis and
    # acts as a lane-dense vector accumulator.
    i = pl.program_id(1)

    @pl.when(i == 0)
    def _():
        out_ref[...] = jnp.zeros_like(out_ref)

    old = old_ref[...].astype(jnp.float32)
    new = new_ref[...].astype(jnp.float32)
    d = old - new
    sq = d * d
    # (tile_rows, 128) -> (tile_rows//8, 8, 128); the axis-0 sum is vreg-wise VPU
    # adds (no (8,128) tile boundary is crossed, so the reshape is layout-free).
    partial = jnp.sum(sq.reshape(-1, SUBLANE, LANE), axis=0)
    out_ref[...] += partial[None, :, :]


def _stage_slab(params, padded_rows):
    """Flatten + concat + zero-pad into a lane-dense (padded_rows, 128) slab.

    The pad is appended to the concatenate input list so the whole slab is
    materialized exactly once (no separate pad pass over HBM).
    """
    parts = [jnp.asarray(p).reshape(-1) for p in params]
    n = sum(int(p.shape[0]) for p in parts)
    total = padded_rows * LANE
    if total > n:
        pad_dtype = jnp.result_type(*parts)
        parts = parts + [jnp.zeros((total - n,), dtype=pad_dtype)]
    flat = parts[0] if len(parts) == 1 else jnp.concatenate(parts)
    return flat.reshape(padded_rows, LANE)


@functools.partial(jax.jit, static_argnames=("tile_rows",))
def _parameter_change_staged(current_params, old2d, tile_rows):
    padded_rows = old2d.shape[0]
    new2d = _stage_slab(current_params, padded_rows)

    num_blocks = padded_rows // tile_rows
    blocks_per_shard = num_blocks // NUM_CORE_SHARDS
    grid = (NUM_CORE_SHARDS, blocks_per_shard)

    def in_map(c, i):
        return (c * blocks_per_shard + i, 0)

    partials = pl.pallas_call(
        _sq_diff_kernel,
        out_shape=jax.ShapeDtypeStruct((NUM_CORE_SHARDS, SUBLANE, LANE), jnp.float32),
        grid_spec=pltpu.PrefetchScalarGridSpec(
            num_scalar_prefetch=0,
            grid=grid,
            in_specs=[
                pl.BlockSpec((tile_rows, LANE), in_map),
                pl.BlockSpec((tile_rows, LANE), in_map),
            ],
            out_specs=pl.BlockSpec((1, SUBLANE, LANE), lambda c, i: (c, 0, 0)),
        ),
        compiler_params=pltpu.CompilerParams(
            dimension_semantics=("parallel", "arbitrary"),
            vmem_limit_bytes=VMEM_LIMIT_BYTES,
        ),
    )(old2d, new2d)
    # Tiny final reduce (2*8*128 f32) fused into the same jit.
    return jnp.sum(partials)


def _round_up(x, m):
    return -(-x // m) * m


class ParameterChange:
    """Equivalent of the PyTorch ParameterChange module.

    The initial snapshot slab is built once at construction; each call only
    restages the current parameters (one fused concat) and runs one Pallas
    HBM-bandwidth-bound reduction.
    """

    def __init__(self, initial_params, max_tile_rows=MAX_TILE_ROWS):
        initial_params = tuple(jnp.asarray(p) for p in initial_params)
        n = sum(int(p.size) for p in initial_params)
        rows_needed = max(1, -(-n // LANE))

        # Max per-block rows: multiple of 8 (sublane), at least 8.
        max_tile = max(SUBLANE, (int(max_tile_rows) // SUBLANE) * SUBLANE)

        # Pick the block count first (multiple of NUM_CORE_SHARDS), then balance
        # rows across blocks.  This bounds zero-padding to ~8 rows per block
        # instead of up to a whole 2*tile_rows chunk, while keeping blocks large.
        blocks = -(-rows_needed // max_tile)
        blocks = _round_up(blocks, NUM_CORE_SHARDS)
        tile_rows = _round_up(-(-rows_needed // blocks), SUBLANE)
        padded_rows = blocks * tile_rows   # >= rows_needed; zero padding is exact: (0-0)^2 = 0

        self._tile_rows = tile_rows
        self._old2d = _stage_slab(initial_params, padded_rows)

    def __call__(self, current_params):
        current_params = tuple(jnp.asarray(p) for p in current_params)
        return _parameter_change_staged(current_params, self._old2d, self._tile_rows)


def parameter_change(current_params, initial_params, max_tile_rows=MAX_TILE_ROWS):
    """One-shot convenience wrapper (restages the snapshot; prefer ParameterChange)."""
    return ParameterChange(initial_params, max_tile_rows=max_tile_rows)(current_params)


def _make_params(key, shapes):
    params = []
    for shape in shapes:
        key, sub = jax.random.split(key)
        params.append(jax.random.normal(sub, shape, dtype=jnp.float32))
    return key, params


if __name__ == "__main__":
    # Small synthetic "module": MLP with in=16, hidden=32, out=8.
    # Parameter shapes mirror torch.nn.Linear(16, 32) and torch.nn.Linear(32, 8).
    shapes = [(32, 16), (32,), (8, 32), (8,)]

    key = jax.random.PRNGKey(0)
    key, initial_params = _make_params(key, shapes)   # snapshot taken at __init__
    key, deltas = _make_params(key, shapes)           # simulated training updates
    current_params = [p + 0.1 * d for p, d in zip(initial_params, deltas)]

    pc = ParameterChange(initial_params)
    result = jax.block_until_ready(pc(current_params))
    ref = sum(jnp.sum((o - n) ** 2) for n, o in zip(current_params, initial_params))
    assert jnp.allclose(result, ref, rtol=1e-5, atol=1e-5), (result, ref)

    # Second call reuses the cached initial slab and compiled kernel.
    current_params2 = [p + 0.05 * d for p, d in zip(initial_params, deltas)]
    result2 = jax.block_until_ready(pc(current_params2))
    ref2 = sum(jnp.sum((o - n) ** 2) for n, o in zip(current_params2, initial_params))
    assert jnp.allclose(result2, ref2, rtol=1e-5, atol=1e-5), (result2, ref2)

    # Forced-tiling check: multiple grid steps per core shard (max_tile_rows=8).
    shapes3 = [(64, 64), (64,), (48, 40)]
    key, init3 = _make_params(key, shapes3)
    key, d3 = _make_params(key, shapes3)
    cur3 = [p + 0.2 * q for p, q in zip(init3, d3)]
    pc3 = ParameterChange(init3, max_tile_rows=8)
    result3 = jax.block_until_ready(pc3(cur3))
    ref3 = sum(jnp.sum((o - n) ** 2) for n, o in zip(cur3, init3))
    assert jnp.allclose(result3, ref3, rtol=1e-5, atol=1e-5), (result3, ref3)

    print("KERNEL_OK")
</pallas_src>

<mosaic_0001>
module attributes {stable_mosaic.version = 11 : i64} {
  func.func @_sq_diff_kernel(%arg0: i32, %arg1: i32, %arg2: memref<8x128xf32, #tpu.memory_space<vmem>>, %arg3: memref<8x128xf32, #tpu.memory_space<vmem>>, %arg4: memref<1x8x128xf32, #tpu.memory_space<vmem>>) attributes {dimension_semantics = [#tpu.dimension_semantics<parallel>, #tpu.dimension_semantics<arbitrary>], iteration_bounds = array<i64: 2, 1>, scalar_prefetch = 0 : i64, scratch_operands = 0 : i64, tpu.core_type = #tpu.core_type<tc>, window_params = [{transform_indices = @transform_0, window_bounds = array<i64: 8, 128>}, {transform_indices = @transform_1, window_bounds = array<i64: 8, 128>}, {transform_indices = @transform_2, window_bounds = array<i64: 1, 8, 128>}]} {
    %c0_i32 = arith.constant 0 : i32
    %0 = arith.cmpi eq, %arg1, %c0_i32 : i32
    %1 = arith.extui %0 : i1 to i32
    %c0_i32_0 = arith.constant 0 : i32
    %2 = arith.cmpi ne, %1, %c0_i32_0 : i32
    scf.if %2 {
      %cst_10 = arith.constant 0.000000e+00 : f32
      %13 = vector.broadcast %cst_10 : f32 to vector<1x8x128xf32>
      %c0_11 = arith.constant 0 : index
      %c0_12 = arith.constant 0 : index
      %c0_13 = arith.constant 0 : index
      %14 = vector.load %arg4[%c0_11, %c0_12, %c0_13] : memref<1x8x128xf32, #tpu.memory_space<vmem>>, vector<1x8x128xf32>
      tpu.vector_store %arg4[%c0_11, %c0_12, %c0_13], %13 {strides = array<i32>} : memref<1x8x128xf32, #tpu.memory_space<vmem>>, vector<1x8x128xf32>,
    } else {
    }
    %c0 = arith.constant 0 : index
    %c0_1 = arith.constant 0 : index
    %3 = vector.load %arg2[%c0, %c0_1] : memref<8x128xf32, #tpu.memory_space<vmem>>, vector<8x128xf32>
    %c0_2 = arith.constant 0 : index
    %c0_3 = arith.constant 0 : index
    %4 = vector.load %arg3[%c0_2, %c0_3] : memref<8x128xf32, #tpu.memory_space<vmem>>, vector<8x128xf32>
    %5 = arith.subf %3, %4 : vector<8x128xf32>
    %6 = arith.mulf %5, %5 : vector<8x128xf32>
    %7 = vector.shape_cast %6 : vector<8x128xf32> to vector<1x8x128xf32>
    %cst = arith.constant dense<0.000000e+00> : vector<8x128xf32>
    %8 = vector.multi_reduction <add>, %7, %cst [0] : vector<1x8x128xf32> to vector<8x128xf32>
    %c0_4 = arith.constant 0 : index
    %c0_5 = arith.constant 0 : index
    %c0_6 = arith.constant 0 : index
    %9 = vector.load %arg4[%c0_4, %c0_5, %c0_6] : memref<1x8x128xf32, #tpu.memory_space<vmem>>, vector<1x8x128xf32>
    %10 = vector.shape_cast %8 : vector<8x128xf32> to vector<1x8x128xf32>
    %11 = arith.addf %9, %10 : vector<1x8x128xf32>
    %c0_7 = arith.constant 0 : index
    %c0_8 = arith.constant 0 : index
    %c0_9 = arith.constant 0 : index
    %12 = vector.load %arg4[%c0_7, %c0_8, %c0_9] : memref<1x8x128xf32, #tpu.memory_space<vmem>>, vector<1x8x128xf32>
    tpu.vector_store %arg4[%c0_7, %c0_8, %c0_9], %11 {strides = array<i32>} : memref<1x8x128xf32, #tpu.memory_space<vmem>>, vector<1x8x128xf32>,
    return
  }
  func.func @transform_0(%arg0: i32, %arg1: i32) -> (i32, i32) {
    %c1_i32 = arith.constant 1 : i32
    %0 = arith.muli %arg0, %c1_i32 : i32
    %1 = arith.addi %0, %arg1 : i32
    %c0_i32 = arith.constant 0 : i32
    %c0_i32_0 = arith.constant 0 : i32
    return %1, %c0_i32 : i32, i32
  }
  func.func @transform_1(%arg0: i32, %arg1: i32) -> (i32, i32) {
    %c1_i32 = arith.constant 1 : i32
    %0 = arith.muli %arg0, %c1_i32 : i32
    %1 = arith.addi %0, %arg1 : i32
    %c0_i32 = arith.constant 0 : i32
    %c0_i32_0 = arith.constant 0 : i32
    return %1, %c0_i32 : i32, i32
  }
  func.func @transform_2(%arg0: i32, %arg1: i32) -> (i32, i32, i32) {
    %c0_i32 = arith.constant 0 : i32
    %c0_i32_0 = arith.constant 0 : i32
    %c0_i32_1 = arith.constant 0 : i32
    return %arg0, %c0_i32, %c0_i32_0 : i32, i32, i32
  }
}

</mosaic_0001>

<llo_original>
// kernel: _parameter_change_staged.1
$region0: #{_parameter_change_staged.1}
  #allocation0 [shape = 'u32[]', space=smem, size = 0x4, offset = 0x4, fixed_abs, tag = 'smem constant byte address 0x4 - core index']
  #allocation1 [shape = 'u32[144,128]{1,0:T(1,128)}', space=vmem, size = 0x12000, scoped, tag = 'internal scratch']
  %s0 = inlined_call_operand.vmem [shape: f32[16,128], index: 0, kind: input, shape index: {}]
  %s1 = inlined_call_operand.vmem [shape: f32[16,128], index: 1, kind: input, shape index: {}]
  %s2 = inlined_call_operand.vmem [shape: f32[2,8,128], index: 2, kind: output, shape index: {}]
  %s3 = sld [smem:[#allocation0]]
  $region45: #{_parameter_change_staged.1} parent=0
    _
  %s5 = ssub.s32 1, %s3
  %s6 = scalar_select 0, %s5, %s3
  loop: start=0, step=1, limit=4
  $region2: #{_parameter_change_staged.1} parent=0 // loop_pre_header
    _
  $region3: #{_parameter_change_staged.1} parent=0 // loop_header
    %s8 = sphi 0, %s12
    %p9 = scmp.ge.s32.totalorder %s8, 4
    %s15 = sphi 0, %s27
    %s16 = sphi 0, %s23
    %s17 = sphi 0, %s15
    %s18 = sphi 0, %s16
    %s19 = sphi 0, %s17
    %s20 = sphi 0, %s18
    %s32 = sphi 0, %s34
    %s35 = sphi 0, %s32
    %s36 = sphi 0, %s35
    %s52 = sphi 0, %s36
    %s60 = sphi 0, %s62
    %s63 = sphi 0, %s60
    %s64 = sphi 0, %s63
    %s80 = sphi 0, %s64
    %s86 = sphi 0, %s88
    %s89 = sphi 0, %s86
    %s90 = sphi 0, %s89
    %s106 = sphi 0, %s90
  $region4: #{_parameter_change_staged.1} parent=0 // loop_header_branch
    %11 = sbr.rel (%p9) target = $region8
  $region5: #{_parameter_change_staged.1} parent=0 // loop_body
    %s13 = ssub.s32 %s8, 1
    %s14 = ssub.s32 %s8, 2
    %s21 = sadd.s32 1, %s16
    %p22 = scmp.ge.s32.totalorder %s21, 1
    %s23 = scalar_select %p22, 0, %s21
    %s24 = sadd.s32 1, %s15
    %s25 = scalar_select %p22, %s24, %s15
    %p26 = scmp.ge.s32.totalorder %s25, 2
    %s27 = scalar_select %p26, 0, %s25
    %s28 = sadd.s32 %s15, %s16
    %s29 = sadd.s32 %s27, %s23
    %s30 = ssub.s32 %s28, %s29
    %p31 = scmp.eq.s32.totalorder %s30, 0
    %s33 = sadd.s32 %s32, 1
    %s34 = scalar_select %p31, %s32, %s33
    %p37 = pneg %p31
    %p38 = scmp.eq.s32.totalorder %s8, 1
    %p39 = por %p37, %p38
    %p40 = scmp.ne.s32.totalorder %s32, %s35
    %p41 = scmp.eq.s32.totalorder %s8, 0
    %p42 = por %p40, %p41
    %p43 = scmp.ne.s32.totalorder %s32, %s35
    %p44 = scmp.eq.s32.totalorder %s13, 1
    %p45 = por %p43, %p44
    %p46 = scmp.ne.s32.totalorder %s35, %s36
    %p47 = scmp.eq.s32.totalorder %s13, 0
    %p48 = por %p46, %p47
    %p49 = scmp.ne.s32.totalorder %s35, %s36
    %p50 = scmp.eq.s32.totalorder %s14, 1
    %p51 = por %p49, %p50
    %p53 = scmp.ne.s32.totalorder %s36, %s52
    %p54 = scmp.eq.s32.totalorder %s14, 0
    %p55 = por %p53, %p54
    %s56 = sadd.s32 %s15, %s16
    %s57 = sadd.s32 %s27, %s23
    %s58 = ssub.s32 %s56, %s57
    %p59 = scmp.eq.s32.totalorder %s58, 0
    %s61 = sadd.s32 %s60, 1
    %s62 = scalar_select %p59, %s60, %s61
    %p65 = pneg %p59
    %p66 = scmp.eq.s32.totalorder %s8, 1
    %p67 = por %p65, %p66
    %p68 = scmp.ne.s32.totalorder %s60, %s63
    %p69 = scmp.eq.s32.totalorder %s8, 0
    %p70 = por %p68, %p69
    %p71 = scmp.ne.s32.totalorder %s60, %s63
    %p72 = scmp.eq.s32.totalorder %s13, 1
    %p73 = por %p71, %p72
    %p74 = scmp.ne.s32.totalorder %s63, %s64
    %p75 = scmp.eq.s32.totalorder %s13, 0
    %p76 = por %p74, %p75
    %p77 = scmp.ne.s32.totalorder %s63, %s64
    %p78 = scmp.eq.s32.totalorder %s14, 1
    %p79 = por %p77, %p78
    %p81 = scmp.ne.s32.totalorder %s64, %s80
    %p82 = scmp.eq.s32.totalorder %s14, 0
    %p83 = por %p81, %p82
    %s84 = ssub.s32 %s15, %s27
    %p85 = scmp.eq.s32.totalorder %s84, 0
    %s87 = sadd.s32 %s86, 1
    %s88 = scalar_select %p85, %s86, %s87
    %p91 = pneg %p85
    %p92 = scmp.eq.s32.totalorder %s8, 1
    %p93 = por %p91, %p92
    %p94 = scmp.ne.s32.totalorder %s86, %s89
    %p95 = scmp.eq.s32.totalorder %s8, 0
    %p96 = por %p94, %p95
    %p97 = scmp.ne.s32.totalorder %s86, %s89
    %p98 = scmp.eq.s32.totalorder %s13, 1
    %p99 = por %p97, %p98
    %p100 = scmp.ne.s32.totalorder %s89, %s90
    %p101 = scmp.eq.s32.totalorder %s13, 0
    %p102 = por %p100, %p101
    %p103 = scmp.ne.s32.totalorder %s89, %s90
    %p104 = scmp.eq.s32.totalorder %s14, 1
    %p105 = por %p103, %p104
    %p107 = scmp.ne.s32.totalorder %s90, %s106
    %p108 = scmp.eq.s32.totalorder %s14, 0
    %p109 = por %p107, %p108
    %p110 = scmp.le.s32.totalorder 1, %s8
    %p111 = scmp.lt.s32.totalorder %s8, 3
    %p112 = pnand %p110, %p111
    %p113 = pneg %p112
    // Predicated region
    $region9: #{_parameter_change_staged.1} parent=5 // pred_check
      _
    $region10: #{_parameter_change_staged.1} parent=5 // pred_check_branch
      %115 = sbr.rel (%p112) target = $region12
    $region11: #{_parameter_change_staged.1} parent=5 // pred_region
      %s116 = ssub.s32 %s8, 1
    $region12: #{_parameter_change_staged.1} parent=5 // pred_fallthru
      _
    %p117 = scmp.lt.s32.totalorder %s8, 2
    // Predicated region
    $region13: #{_parameter_change_staged.1} parent=5 // pred_check
      %p118 = pneg %p117
    $region14: #{_parameter_change_staged.1} parent=5 // pred_check_branch
      %120 = sbr.rel (%p118) target = $region16
    $region15: #{_parameter_change_staged.1} parent=5 // pred_region
      // Predicated region
      $region17: #{_parameter_change_staged.1} parent=15 // pred_check
        %p121 = pneg %p42
      $region18: #{_parameter_change_staged.1} parent=15 // pred_check_branch
        %123 = sbr.rel (%p121) target = $region20
      $region19: #{_parameter_change_staged.1} parent=15 // pred_region
        %s124 = sadd.s32 %s15, %s16
        %p125 = scmp.lt.s32.totalorder %s124, 1
        %s126 = scalar_select %p125, %s124, 1
        %s127 = smul.addr %s126, 8
        %s128 = scalar_lea.vmem %s0, %s127
        %s129 = sadd.s32 %s15, %s16
      $region20: #{_parameter_change_staged.1} parent=15 // pred_fallthru
        _
      // Predicated region
      $region21: #{_parameter_change_staged.1} parent=15 // pred_check
        %p130 = pneg %p70
      $region22: #{_parameter_change_staged.1} parent=15 // pred_check_branch
        %132 = sbr.rel (%p130) target = $region24
      $region23: #{_parameter_change_staged.1} parent=15 // pred_region
        %s133 = sadd.s32 %s15, %s16
        %p134 = scmp.lt.s32.totalorder %s133, 1
        %s135 = scalar_select %p134, %s133, 1
        %s136 = smul.addr %s135, 8
        %s137 = scalar_lea.vmem %s1, %s136
        %s138 = sadd.s32 %s15, %s16
      $region24: #{_parameter_change_staged.1} parent=15 // pred_fallthru
        _
    $region16: #{_parameter_change_staged.1} parent=5 // pred_fallthru
      _
    %p139 = scmp.le.s32.totalorder 1, %s8
    %p140 = scmp.lt.s32.totalorder %s8, 3
    %p141 = pnand %p139, %p140
    %p142 = pneg %p141
    // Predicated region
    $region25: #{_parameter_change_staged.1} parent=5 // pred_check
      _
    $region26: #{_parameter_change_staged.1} parent=5 // pred_check_branch
      %144 = sbr.rel (%p141) target = $region28
    $region27: #{_parameter_change_staged.1} parent=5 // pred_region
      %s145 = ssub.s32 %s8, 1
      %s146 = sadd.s32 %s17, %s18
      %p147 = scmp.lt.s32.totalorder %s146, 1
      %s148 = scalar_select %p147, %s146, 1
      %s149 = smul.addr %s148, 8
      %s150 = scalar_lea.vmem %s0, %s149
      %p151 = pneg %p48
      %p152 = pneg %p45
      %s153 = sadd.s32 %s17, %s18
      %p154 = scmp.lt.s32.totalorder %s153, 1
      %s155 = scalar_select %p154, %s153, 1
      %s156 = smul.addr %s155, 8
      %s157 = scalar_lea.vmem %s1, %s156
      %p158 = pneg %p76
      %p159 = pneg %p73
      %p160 = pneg %p102
      %p161 = pneg %p99
      %p162 = scmp.lt.s32.totalorder %s17, 1
      %s163 = scalar_select %p162, %s17, 1
      %s164 = smul.addr %s163, 8
      %s165 = scalar_lea.vmem %s2, %s164
      %s166 = sadd.s32 %s17, %s18
      %p167 = scmp.lt.s32.totalorder %s166, 1
      %s168 = scalar_select %p167, %s166, 1
      %s169 = smul.addr %s168, 8
      %s170 = scalar_lea.vmem %s0, %s169
      %s171 = sadd.s32 %s17, %s18
      %s172 = sadd.s32 %s17, %s18
      %p173 = scmp.lt.s32.totalorder %s172, 1
      %s174 = scalar_select %p173, %s172, 1
      %s175 = smul.addr %s174, 8
      %s176 = scalar_lea.vmem %s1, %s175
      %s177 = sadd.s32 %s17, %s18
      %p178 = scmp.lt.s32.totalorder %s17, 1
      %s179 = scalar_select %p178, %s17, 1
      %s180 = smul.addr %s179, 8
      %s181 = scalar_lea.vmem %s2, %s180
      %p182 = scmp.eq.s32.totalorder %s18, 0
      // Predicated region
      $region29: #{_parameter_change_staged.1} parent=27 // pred_check
        %p183 = pneg %p182
      $region30: #{_parameter_change_staged.1} parent=27 // pred_check_branch
        %185 = sbr.rel (%p183) target = $region32
      $region31: #{_parameter_change_staged.1} parent=27 // pred_region
        %186 = vst [vmem:[%s181] sm:$0xff] 0.0
      $region32: #{_parameter_change_staged.1} parent=27 // pred_fallthru
        _
      %v187 = vld [vmem:[%s170] sm:$0xff]
      %v188 = vld [vmem:[%s176] sm:$0xff]
      %v189 = vsub.f32 %v187, %v188
      %v190 = vmul.f32 %v189, %v189
      %v191 = vadd.f32 %v190, 0.0
      %v192 = vld [vmem:[%s181] sm:$0xff]
      %v193 = vadd.f32 %v192, %v191
      %194 = vst [vmem:[%s181] sm:$0xff] %v193
      %p195 = scmp.lt.s32.totalorder %s17, 1
      %s196 = scalar_select %p195, %s17, 1
      %s197 = smul.addr %s196, 8
      %s198 = scalar_lea.vmem %s2, %s197
      // Predicated region
      $region33: #{_parameter_change_staged.1} parent=27 // pred_check
        %p199 = pneg %p99
      $region34: #{_parameter_change_staged.1} parent=27 // pred_check_branch
        %201 = sbr.rel (%p199) target = $region36
      $region35: #{_parameter_change_staged.1} parent=27 // pred_region
        _
      $region36: #{_parameter_change_staged.1} parent=27 // pred_fallthru
        _
    $region28: #{_parameter_change_staged.1} parent=5 // pred_fallthru
      _
    %p202 = scmp.le.s32.totalorder 2, %s8
    // Predicated region
    $region37: #{_parameter_change_staged.1} parent=5 // pred_check
      %p203 = pneg %p202
    $region38: #{_parameter_change_staged.1} parent=5 // pred_check_branch
      %205 = sbr.rel (%p203) target = $region40
    $region39: #{_parameter_change_staged.1} parent=5 // pred_region
      %s206 = ssub.s32 %s8, 2
      // Predicated region
      $region41: #{_parameter_change_staged.1} parent=39 // pred_check
        %p207 = pneg %p105
      $region42: #{_parameter_change_staged.1} parent=39 // pred_check_branch
        %209 = sbr.rel (%p207) target = $region44
      $region43: #{_parameter_change_staged.1} parent=39 // pred_region
        %p210 = scmp.lt.s32.totalorder %s19, 1
        %s211 = scalar_select %p210, %s19, 1
        %s212 = smul.addr %s211, 8
        %s213 = scalar_lea.vmem %s2, %s212
      $region44: #{_parameter_change_staged.1} parent=39 // pred_fallthru
        _
    $region40: #{_parameter_change_staged.1} parent=5 // pred_fallthru
      _
  $region6: #{_parameter_change_staged.1} parent=0 // loop_footer
    %s12 = sadd.s32 1, %s8
  $region7: #{_parameter_change_staged.1} parent=0 // loop_footer_branch
    %7 = sbr.rel target = $region3
  $region8: #{_parameter_change_staged.1} parent=0 // loop_exit
    _

</llo_original>
